<compile_context>
chip_gen: v7x
topology: tpu7x:2x2x1
jax: 0.10.0
libtpu: 0.0.40
codegen_flags: <defaults>
</compile_context>

<pallas_src>
import functools

import jax
import jax.numpy as jnp
from jax.experimental import pallas as pl
from jax.experimental.pallas import tpu as pltpu


def _prob_ppd_kernel(ignore_label, logits_ref, tgt_ref, out_ref):
    i = pl.program_id(1)

    # Zero this shard's VMEM-resident accumulator at the start of its row sweep.
    @pl.when(i == 0)
    def _():
        out_ref[...] = jnp.zeros_like(out_ref)

    x = logits_ref[...].astype(jnp.float32)            # (tm, K)
    t = tgt_ref[...]                                   # (tm, 1) int32
    tm, k = x.shape

    # torch.gather + (1-g)^2 expressed as a masked elementwise square so the
    # reduction is a lane-dense per-column sum (VALU vreg adds + one sublane
    # reduce per step) instead of a per-row cross-lane (XLU) reduce.
    col = jax.lax.broadcasted_iota(jnp.int32, (tm, k), 1)
    hit = (col == t) & (t != ignore_label)             # <= 1 hit per valid row;
    # ignored / padded / ragged-tail rows (t == ignore_label) never hit, so
    # garbage logits rows past the real N can never leak into the sum.
    d = jnp.where(hit, 1.0 - x, 0.0)                   # NaN/garbage-safe select
    out_ref[...] += jnp.sum(d * d, axis=0, keepdims=True)[None]   # (1, 1, K)


def _round_up(x, m):
    return ((x + m - 1) // m) * m


def _default_num_shards():
    # v7x has 2 TensorCores per chip; v5e/v6e have 1, so a parallel shard axis
    # only pays for itself on v7x.
    try:
        kind = jax.devices()[0].device_kind.lower()
    except Exception:
        return 1
    return 2 if ("v7" in kind or "7x" in kind) else 1


def prob_ppd_loss(contrast_logits, contrast_target, *, ignore_label=-1,
                  sim_measure="cosine", tm=None, num_shards=None,
                  logits_in_bf16=False):
    """Pallas implementation of ProbPPDLoss.forward."""
    # PyTorch: `if self.sim_measure == 'cosine' or 'match_prob':` -- the second
    # operand is a truthy string literal, so this branch is ALWAYS taken; the
    # 'wasserstein'/'mls' branch is dead code and sim_measure is irrelevant.
    del sim_measure

    n, k = contrast_logits.shape

    # Valid-row count: cheap scalar XLA reduction, kept out of the kernel.
    # (int32 sum -> exact; cast to f32 only for the final division.)
    valid_cnt = jnp.sum(contrast_target != ignore_label).astype(jnp.float32)

    if num_shards is None:
        num_shards = _default_num_shards()

    # ---- Tile size: memory-bound kernel, so take the largest row tile whose
    # double-buffered logits stream stays within ~8 MiB (conservative for
    # v7x's 64 MiB VMEM; lots of headroom on v5e/v6e's 128 MiB).
    if tm is None:
        tile_budget = 8 * 1024 * 1024
        tm = tile_budget // (2 * k * 4)                # sized in f32 bytes
        tm = max(128, min(2048, (tm // 128) * 128))
    tm = min(tm, _round_up(max(n, 1), 128))            # don't exceed the problem

    if logits_in_bf16:
        # Numerics trade-off flag: halves HBM traffic of the only large
        # operand; the kernel upcasts to f32 before computing (1 - x)^2.
        contrast_logits = contrast_logits.astype(jnp.bfloat16)

    tgt = contrast_target.astype(jnp.int32).reshape(n, 1)

    if n < tm:
        # Tiny problem: padding both operands up to one tile is essentially free.
        pad = tm - n
        contrast_logits = jnp.pad(contrast_logits, ((0, pad), (0, 0)))
        tgt = jnp.pad(tgt, ((0, pad), (0, 0)), constant_values=ignore_label)
        n = tm

    # For n >= tm the logits stay UNPADDED: the ragged last block's
    # out-of-bounds rows contain unspecified data but are masked because the
    # corresponding (padded) targets carry ignore_label.
    n_blocks = pl.cdiv(n, tm)
    shards = min(num_shards, n_blocks)   # leading "parallel" axis (v7x only >1)
    spc = pl.cdiv(n_blocks, shards)
    total_blocks = spc * shards

    # Only the small target array is padded so every target block is defined.
    pad_rows = total_blocks * tm - n
    if pad_rows:
        tgt = jnp.pad(tgt, ((0, pad_rows), (0, 0)), constant_values=ignore_label)

    last_block = n_blocks - 1

    def logits_map(c, i):
        # Shard-rounding "phantom" blocks clamp to the last real block; their
        # targets are all ignore_label, so they contribute nothing.
        return (jnp.minimum(c * spc + i, last_block), 0)

    def tgt_map(c, i):
        return (c * spc + i, 0)

    kernel = functools.partial(_prob_ppd_kernel, ignore_label)

    # Per-shard, per-column partial sums of (1 - gathered)^2.  The output block
    # index is constant along the row-sweep axis, so it stays resident in VMEM
    # and acts as the accumulator (no scratch; written back once per shard).
    col_parts = pl.pallas_call(
        kernel,
        out_shape=jax.ShapeDtypeStruct((shards, 1, k), jnp.float32),
        grid_spec=pltpu.PrefetchScalarGridSpec(
            num_scalar_prefetch=0,
            grid=(shards, spc),
            in_specs=[
                pl.BlockSpec((tm, k), logits_map),
                pl.BlockSpec((tm, 1), tgt_map),
            ],
            out_specs=pl.BlockSpec((1, 1, k), lambda c, i: (c, 0, 0)),
        ),
        compiler_params=pltpu.CompilerParams(
            # TODO(synk): on v7x, verify the "parallel" axis actually lands on
            # both TensorCores (xprof); otherwise switch to pltpu.CORE_PARALLEL.
            dimension_semantics=("parallel", "arbitrary"),
            vmem_limit_bytes=32 * 1024 * 1024,
        ),
    )(contrast_logits, tgt)

    sqsum = jnp.sum(col_parts)
    # 0/0 -> NaN when no rows are valid, matching torch.mean over an empty tensor.
    return sqsum / valid_cnt


def _reference(contrast_logits, contrast_target, ignore_label=-1):
    # Pure-JAX reference mirroring the PyTorch code (no boolean fancy-indexing).
    valid = contrast_target != ignore_label
    idx = jnp.maximum(contrast_target, 0).astype(jnp.int32)[:, None]
    g = jnp.take_along_axis(contrast_logits, idx, axis=1)[:, 0]
    sq = jnp.where(valid, (1.0 - g) ** 2, 0.0)
    return jnp.sum(sq) / jnp.sum(valid)


if __name__ == "__main__":
    key = jax.random.PRNGKey(0)

    def make_case(case_key, n, num_k):
        k1, k2, k3 = jax.random.split(case_key, 3)
        logits = jax.random.normal(k1, (n, num_k), dtype=jnp.float32)
        tgt = jax.random.randint(k2, (n,), 0, num_k).astype(jnp.float32)
        ignore = jax.random.bernoulli(k3, 0.15, (n,))
        tgt = jnp.where(ignore, -1.0, tgt)
        return logits, tgt

    k_a, k_b = jax.random.split(key)

    # Case 1: small N (< one tile) -> single-block path.
    logits_a, tgt_a = make_case(k_a, 500, 128)
    loss_a = jax.block_until_ready(prob_ppd_loss(logits_a, tgt_a))
    ref_a = _reference(logits_a, tgt_a)
    assert jnp.allclose(loss_a, ref_a, rtol=1e-4, atol=1e-5), (loss_a, ref_a)

    # Case 2: multi-block with a ragged (un-padded) logits tail (n % tm != 0).
    logits_b, tgt_b = make_case(k_b, 2500, 256)
    loss_b = jax.block_until_ready(prob_ppd_loss(logits_b, tgt_b))
    ref_b = _reference(logits_b, tgt_b)
    assert jnp.allclose(loss_b, ref_b, rtol=1e-4, atol=1e-5), (loss_b, ref_b)

    # Case 3: bf16-logits flag (halves HBM traffic); looser tolerance.
    loss_c = jax.block_until_ready(
        prob_ppd_loss(logits_b, tgt_b, logits_in_bf16=True))
    assert jnp.allclose(loss_c, ref_b, rtol=2e-2, atol=2e-3), (loss_c, ref_b)

    print("KERNEL_OK")
</pallas_src>

<mosaic_0001>
module attributes {stable_mosaic.version = 11 : i64} {
  func.func @_prob_ppd_kernel(%arg0: i32, %arg1: i32, %arg2: memref<512x128xf32, #tpu.memory_space<vmem>>, %arg3: memref<512x1xi32, #tpu.memory_space<vmem>>, %arg4: memref<1x1x128xf32, #tpu.memory_space<vmem>>) attributes {dimension_semantics = [#tpu.dimension_semantics<parallel>, #tpu.dimension_semantics<arbitrary>], iteration_bounds = array<i64: 1, 1>, scalar_prefetch = 0 : i64, scratch_operands = 0 : i64, tpu.core_type = #tpu.core_type<tc>, window_params = [{transform_indices = @transform_0, window_bounds = array<i64: 512, 128>}, {transform_indices = @transform_1, window_bounds = array<i64: 512, 1>}, {transform_indices = @transform_2, window_bounds = array<i64: 1, 1, 128>}]} {
    %c0_i32 = arith.constant 0 : i32
    %0 = arith.cmpi eq, %arg1, %c0_i32 : i32
    %1 = arith.extui %0 : i1 to i32
    %c0_i32_0 = arith.constant 0 : i32
    %2 = arith.cmpi ne, %1, %c0_i32_0 : i32
    scf.if %2 {
      %cst_12 = arith.constant 0.000000e+00 : f32
      %23 = vector.broadcast %cst_12 : f32 to vector<1x1x128xf32>
      %c0_13 = arith.constant 0 : index
      %c0_14 = arith.constant 0 : index
      %c0_15 = arith.constant 0 : index
      %24 = vector.load %arg4[%c0_13, %c0_14, %c0_15] : memref<1x1x128xf32, #tpu.memory_space<vmem>>, vector<1x1x128xf32>
      tpu.vector_store %arg4[%c0_13, %c0_14, %c0_15], %23 {strides = array<i32>} : memref<1x1x128xf32, #tpu.memory_space<vmem>>, vector<1x1x128xf32>,
    } else {
    }
    %c0 = arith.constant 0 : index
    %c0_1 = arith.constant 0 : index
    %3 = vector.load %arg2[%c0, %c0_1] : memref<512x128xf32, #tpu.memory_space<vmem>>, vector<512x128xf32>
    %c0_2 = arith.constant 0 : index
    %c0_3 = arith.constant 0 : index
    %4 = vector.load %arg3[%c0_2, %c0_3] : memref<512x1xi32, #tpu.memory_space<vmem>>, vector<512x1xi32>
    %5 = tpu.iota {dimensions = array<i32: 1>} : vector<512x128xi32>
    %6 = vector.broadcast %4 : vector<512x1xi32> to vector<512x128xi32>
    %7 = arith.cmpi eq, %5, %6 : vector<512x128xi32>
    %c-1_i32 = arith.constant -1 : i32
    %8 = vector.broadcast %c-1_i32 : i32 to vector<512x1xi32>
    %9 = arith.cmpi ne, %4, %8 : vector<512x1xi32>
    %10 = vector.broadcast %9 : vector<512x1xi1> to vector<512x128xi1>
    %11 = arith.andi %7, %10 : vector<512x128xi1>
    %cst = arith.constant 1.000000e+00 : f32
    %12 = vector.broadcast %cst : f32 to vector<512x128xf32>
    %13 = arith.subf %12, %3 : vector<512x128xf32>
    %cst_4 = arith.constant 0.000000e+00 : f32
    %14 = vector.broadcast %cst_4 : f32 to vector<512x128xf32>
    %15 = arith.select %11, %13, %14 : vector<512x128xi1>, vector<512x128xf32>
    %c0_5 = arith.constant 0 : index
    %c0_6 = arith.constant 0 : index
    %c0_7 = arith.constant 0 : index
    %16 = vector.load %arg4[%c0_5, %c0_6, %c0_7] : memref<1x1x128xf32, #tpu.memory_space<vmem>>, vector<1x1x128xf32>
    %17 = arith.mulf %15, %15 : vector<512x128xf32>
    %cst_8 = arith.constant dense<0.000000e+00> : vector<128xf32>
    %18 = vector.multi_reduction <add>, %17, %cst_8 [0] : vector<512x128xf32> to vector<128xf32>
    %19 = vector.shape_cast %18 : vector<128xf32> to vector<1x128xf32>
    %20 = vector.shape_cast %19 : vector<1x128xf32> to vector<1x1x128xf32>
    %21 = arith.addf %16, %20 : vector<1x1x128xf32>
    %c0_9 = arith.constant 0 : index
    %c0_10 = arith.constant 0 : index
    %c0_11 = arith.constant 0 : index
    %22 = vector.load %arg4[%c0_9, %c0_10, %c0_11] : memref<1x1x128xf32, #tpu.memory_space<vmem>>, vector<1x1x128xf32>
    tpu.vector_store %arg4[%c0_9, %c0_10, %c0_11], %21 {strides = array<i32>} : memref<1x1x128xf32, #tpu.memory_space<vmem>>, vector<1x1x128xf32>,
    return
  }
  func.func @transform_0(%arg0: i32, %arg1: i32) -> (i32, i32) {
    %c1_i32 = arith.constant 1 : i32
    %0 = arith.muli %arg0, %c1_i32 : i32
    %1 = arith.addi %0, %arg1 : i32
    %c0_i32 = arith.constant 0 : i32
    %2 = arith.minsi %1, %c0_i32 : i32
    %c0_i32_0 = arith.constant 0 : i32
    %c0_i32_1 = arith.constant 0 : i32
    return %2, %c0_i32_0 : i32, i32
  }
  func.func @transform_1(%arg0: i32, %arg1: i32) -> (i32, i32) {
    %c1_i32 = arith.constant 1 : i32
    %0 = arith.muli %arg0, %c1_i32 : i32
    %1 = arith.addi %0, %arg1 : i32
    %c0_i32 = arith.constant 0 : i32
    %c0_i32_0 = arith.constant 0 : i32
    return %1, %c0_i32 : i32, i32
  }
  func.func @transform_2(%arg0: i32, %arg1: i32) -> (i32, i32, i32) {
    %c0_i32 = arith.constant 0 : i32
    %c0_i32_0 = arith.constant 0 : i32
    %c0_i32_1 = arith.constant 0 : i32
    return %arg0, %c0_i32, %c0_i32_0 : i32, i32, i32
  }
}

</mosaic_0001>

<llo_original>
// kernel: tpu_custom_call.1
$region0: #{tpu_custom_call.1}
  #allocation0 [shape = 'u32[]', space=smem, size = 0x4, offset = 0x4, fixed_abs, tag = 'smem constant byte address 0x4 - core index']
  #allocation1 [shape = 'u32[144,128]{1,0:T(1,128)}', space=vmem, size = 0x12000, scoped, tag = 'internal scratch']
  %s0 = inlined_call_operand.vmem [shape: f32[512,128], index: 0, kind: input, shape index: {}]
  %s1 = inlined_call_operand.vmem [shape: s32[512,1], index: 1, kind: input, shape index: {}]
  %s2 = inlined_call_operand.hbm [shape: f32[1,1,128], index: 2, kind: output, shape index: {}]
  %s3 = sld [smem:[#allocation0]]
  $region22: #{tpu_custom_call.1} parent=0
    _
  %s5 = ssub.s32 1, %s3
  %s6 = scalar_select 0, %s5, %s3
  $region1: #{tpu_custom_call.1} parent=0
    #allocation2 [shape = 'u8[512]{0}', space=vmem, size = 0x400, scoped, tag = 'output window, operand 0, single buffered']
    #allocation3 [shape = 's32[1]{0}', space=sflag, size = 0x4, scoped, tag = 'scoped memory for tpu_custom_call.1']
    %7 = vsyncpa [#allocation3], 0
    // Predicated region
    $region2: #{tpu_custom_call.1} parent=1 // pred_check
      _
    $region3: #{tpu_custom_call.1} parent=1 // pred_check_branch
      %9 = sbr.rel (0) target = $region5
    $region4: #{tpu_custom_call.1} parent=1 // pred_region
      %s10 = sadd.s32 0, 0
      %p11 = scmp.lt.s32.totalorder %s10, 0
      %s12 = scalar_select %p11, %s10, 0
      %s13 = smul.u32 64, %s12
      %p14 = scmp.lt.s32.totalorder %s13, 63
      %s15 = scalar_select %p14, %s13, 63
      %s16 = smul.addr %s15, 8
      %s17 = scalar_lea.vmem %s0, %s16
      %s18 = sadd.s32 0, 0
      %p19 = scmp.lt.s32.totalorder %s18, 0
      %s20 = scalar_select %p19, %s18, 0
      %s21 = smul.u32 64, %s20
    $region5: #{tpu_custom_call.1} parent=1 // pred_fallthru
      _
    // Predicated region
    $region6: #{tpu_custom_call.1} parent=1 // pred_check
      _
    $region7: #{tpu_custom_call.1} parent=1 // pred_check_branch
      %23 = sbr.rel (0) target = $region9
    $region8: #{tpu_custom_call.1} parent=1 // pred_region
      %s24 = sadd.s32 0, 0
      %s25 = smul.u32 64, %s24
      %p26 = scmp.lt.s32.totalorder %s25, 63
      %s27 = scalar_select %p26, %s25, 63
      %s28 = smul.addr %s27, 8
      %s29 = scalar_lea.vmem %s1, %s28
      %s30 = sadd.s32 0, 0
      %s31 = smul.u32 64, %s30
    $region9: #{tpu_custom_call.1} parent=1 // pred_fallthru
      _
    %s32 = sadd.s32 0, 0
    %p33 = scmp.lt.s32.totalorder %s32, 0
    %s34 = scalar_select %p33, %s32, 0
    %s35 = smul.u32 64, %s34
    %p36 = scmp.lt.s32.totalorder %s35, 63
    %s37 = scalar_select %p36, %s35, 63
    %s38 = smul.addr %s37, 8
    %s39 = scalar_lea.vmem %s0, %s38
    %s40 = sadd.s32 0, 0
    %s41 = smul.u32 64, %s40
    %p42 = scmp.lt.s32.totalorder %s41, 63
    %s43 = scalar_select %p42, %s41, 63
    %s44 = smul.addr %s43, 8
    %s45 = scalar_lea.vmem %s1, %s44
    %s46 = sadd.s32 0, 0
    %p47 = scmp.lt.s32.totalorder %s46, 0
    %s48 = scalar_select %p47, %s46, 0
    %s49 = smul.u32 64, %s48
    %p50 = scmp.lt.s32.totalorder %s49, 63
    %s51 = scalar_select %p50, %s49, 63
    %s52 = smul.addr %s51, 8
    %s53 = scalar_lea.vmem %s0, %s52
    %s54 = sadd.s32 0, 0
    %p55 = scmp.lt.s32.totalorder %s54, 0
    %s56 = scalar_select %p55, %s54, 0
    %s57 = smul.u32 64, %s56
    %s58 = sadd.s32 0, 0
    %s59 = smul.u32 64, %s58
    %p60 = scmp.lt.s32.totalorder %s59, 63
    %s61 = scalar_select %p60, %s59, 63
    %s62 = smul.addr %s61, 8
    %s63 = scalar_lea.vmem %s1, %s62
    %s64 = sadd.s32 0, 0
    %s65 = smul.u32 64, %s64
    %p66 = scmp.eq.s32.totalorder 0, 0
    // Predicated region
    $region10: #{tpu_custom_call.1} parent=1 // pred_check
      %p67 = pneg %p66
    $region11: #{tpu_custom_call.1} parent=1 // pred_check_branch
      %69 = sbr.rel (%p67) target = $region13
    $region12: #{tpu_custom_call.1} parent=1 // pred_region
      %70 = vst [vmem:[#allocation2] sm:$0x1] 0.0
    $region13: #{tpu_custom_call.1} parent=1 // pred_fallthru
      _
    %v71 = vld [vmem:[%s53] sm:$0xff]
    %v72 = vld [vmem:[%s53 + $0x8] sm:$0xff]
    %v73 = vld [vmem:[%s53 + $0x10] sm:$0xff]
    %v74 = vld [vmem:[%s53 + $0x18] sm:$0xff]
    %v75 = vld [vmem:[%s53 + $0x20] sm:$0xff]
    %v76 = vld [vmem:[%s53 + $0x28] sm:$0xff]
    %v77 = vld [vmem:[%s53 + $0x30] sm:$0xff]
    %v78 = vld [vmem:[%s53 + $0x38] sm:$0xff]
    %v79 = vld [vmem:[%s53 + $0x40] sm:$0xff]
    %v80 = vld [vmem:[%s53 + $0x48] sm:$0xff]
    %v81 = vld [vmem:[%s53 + $0x50] sm:$0xff]
    %v82 = vld [vmem:[%s53 + $0x58] sm:$0xff]
    %v83 = vld [vmem:[%s53 + $0x60] sm:$0xff]
    %v84 = vld [vmem:[%s53 + $0x68] sm:$0xff]
    %v85 = vld [vmem:[%s53 + $0x70] sm:$0xff]
    %v86 = vld [vmem:[%s53 + $0x78] sm:$0xff]
    %v87 = vld [vmem:[%s53 + $0x80] sm:$0xff]
    %v88 = vld [vmem:[%s53 + $0x88] sm:$0xff]
    %v89 = vld [vmem:[%s53 + $0x90] sm:$0xff]
    %v90 = vld [vmem:[%s53 + $0x98] sm:$0xff]
    %v91 = vld [vmem:[%s53 + $0xa0] sm:$0xff]
    %v92 = vld [vmem:[%s53 + $0xa8] sm:$0xff]
    %v93 = vld [vmem:[%s53 + $0xb0] sm:$0xff]
    %v94 = vld [vmem:[%s53 + $0xb8] sm:$0xff]
    %v95 = vld [vmem:[%s53 + $0xc0] sm:$0xff]
    %v96 = vld [vmem:[%s53 + $0xc8] sm:$0xff]
    %v97 = vld [vmem:[%s53 + $0xd0] sm:$0xff]
    %v98 = vld [vmem:[%s53 + $0xd8] sm:$0xff]
    %v99 = vld [vmem:[%s53 + $0xe0] sm:$0xff]
    %v100 = vld [vmem:[%s53 + $0xe8] sm:$0xff]
    %v101 = vld [vmem:[%s53 + $0xf0] sm:$0xff]
    %v102 = vld [vmem:[%s53 + $0xf8] sm:$0xff]
    %v103 = vld [vmem:[%s53 + $0x100] sm:$0xff]
    %v104 = vld [vmem:[%s53 + $0x108] sm:$0xff]
    %v105 = vld [vmem:[%s53 + $0x110] sm:$0xff]
    %v106 = vld [vmem:[%s53 + $0x118] sm:$0xff]
    %v107 = vld [vmem:[%s53 + $0x120] sm:$0xff]
    %v108 = vld [vmem:[%s53 + $0x128] sm:$0xff]
    %v109 = vld [vmem:[%s53 + $0x130] sm:$0xff]
    %v110 = vld [vmem:[%s53 + $0x138] sm:$0xff]
    %v111 = vld [vmem:[%s53 + $0x140] sm:$0xff]
    %v112 = vld [vmem:[%s53 + $0x148] sm:$0xff]
    %v113 = vld [vmem:[%s53 + $0x150] sm:$0xff]
    %v114 = vld [vmem:[%s53 + $0x158] sm:$0xff]
    %v115 = vld [vmem:[%s53 + $0x160] sm:$0xff]
    %v116 = vld [vmem:[%s53 + $0x168] sm:$0xff]
    %v117 = vld [vmem:[%s53 + $0x170] sm:$0xff]
    %v118 = vld [vmem:[%s53 + $0x178] sm:$0xff]
    %v119 = vld [vmem:[%s53 + $0x180] sm:$0xff]
    %v120 = vld [vmem:[%s53 + $0x188] sm:$0xff]
    %v121 = vld [vmem:[%s53 + $0x190] sm:$0xff]
    %v122 = vld [vmem:[%s53 + $0x198] sm:$0xff]
    %v123 = vld [vmem:[%s53 + $0x1a0] sm:$0xff]
    %v124 = vld [vmem:[%s53 + $0x1a8] sm:$0xff]
    %v125 = vld [vmem:[%s53 + $0x1b0] sm:$0xff]
    %v126 = vld [vmem:[%s53 + $0x1b8] sm:$0xff]
    %v127 = vld [vmem:[%s53 + $0x1c0] sm:$0xff]
    %v128 = vld [vmem:[%s53 + $0x1c8] sm:$0xff]
    %v129 = vld [vmem:[%s53 + $0x1d0] sm:$0xff]
    %v130 = vld [vmem:[%s53 + $0x1d8] sm:$0xff]
    %v131 = vld [vmem:[%s53 + $0x1e0] sm:$0xff]
    %v132 = vld [vmem:[%s53 + $0x1e8] sm:$0xff]
    %v133 = vld [vmem:[%s53 + $0x1f0] sm:$0xff]
    %v134 = vld [vmem:[%s53 + $0x1f8] sm:$0xff]
    %v135 = vld [vmem:[%s63] sm:$0xff]
    %v136 = vld [vmem:[%s63 + $0x8] sm:$0xff]
    %v137 = vld [vmem:[%s63 + $0x10] sm:$0xff]
    %v138 = vld [vmem:[%s63 + $0x18] sm:$0xff]
    %v139 = vld [vmem:[%s63 + $0x20] sm:$0xff]
    %v140 = vld [vmem:[%s63 + $0x28] sm:$0xff]
    %v141 = vld [vmem:[%s63 + $0x30] sm:$0xff]
    %v142 = vld [vmem:[%s63 + $0x38] sm:$0xff]
    %v143 = vld [vmem:[%s63 + $0x40] sm:$0xff]
    %v144 = vld [vmem:[%s63 + $0x48] sm:$0xff]
    %v145 = vld [vmem:[%s63 + $0x50] sm:$0xff]
    %v146 = vld [vmem:[%s63 + $0x58] sm:$0xff]
    %v147 = vld [vmem:[%s63 + $0x60] sm:$0xff]
    %v148 = vld [vmem:[%s63 + $0x68] sm:$0xff]
    %v149 = vld [vmem:[%s63 + $0x70] sm:$0xff]
    %v150 = vld [vmem:[%s63 + $0x78] sm:$0xff]
    %v151 = vld [vmem:[%s63 + $0x80] sm:$0xff]
    %v152 = vld [vmem:[%s63 + $0x88] sm:$0xff]
    %v153 = vld [vmem:[%s63 + $0x90] sm:$0xff]
    %v154 = vld [vmem:[%s63 + $0x98] sm:$0xff]
    %v155 = vld [vmem:[%s63 + $0xa0] sm:$0xff]
    %v156 = vld [vmem:[%s63 + $0xa8] sm:$0xff]
    %v157 = vld [vmem:[%s63 + $0xb0] sm:$0xff]
    %v158 = vld [vmem:[%s63 + $0xb8] sm:$0xff]
    %v159 = vld [vmem:[%s63 + $0xc0] sm:$0xff]
    %v160 = vld [vmem:[%s63 + $0xc8] sm:$0xff]
    %v161 = vld [vmem:[%s63 + $0xd0] sm:$0xff]
    %v162 = vld [vmem:[%s63 + $0xd8] sm:$0xff]
    %v163 = vld [vmem:[%s63 + $0xe0] sm:$0xff]
    %v164 = vld [vmem:[%s63 + $0xe8] sm:$0xff]
    %v165 = vld [vmem:[%s63 + $0xf0] sm:$0xff]
    %v166 = vld [vmem:[%s63 + $0xf8] sm:$0xff]
    %v167 = vld [vmem:[%s63 + $0x100] sm:$0xff]
    %v168 = vld [vmem:[%s63 + $0x108] sm:$0xff]
    %v169 = vld [vmem:[%s63 + $0x110] sm:$0xff]
    %v170 = vld [vmem:[%s63 + $0x118] sm:$0xff]
    %v171 = vld [vmem:[%s63 + $0x120] sm:$0xff]
    %v172 = vld [vmem:[%s63 + $0x128] sm:$0xff]
    %v173 = vld [vmem:[%s63 + $0x130] sm:$0xff]
    %v174 = vld [vmem:[%s63 + $0x138] sm:$0xff]
    %v175 = vld [vmem:[%s63 + $0x140] sm:$0xff]
    %v176 = vld [vmem:[%s63 + $0x148] sm:$0xff]
    %v177 = vld [vmem:[%s63 + $0x150] sm:$0xff]
    %v178 = vld [vmem:[%s63 + $0x158] sm:$0xff]
    %v179 = vld [vmem:[%s63 + $0x160] sm:$0xff]
    %v180 = vld [vmem:[%s63 + $0x168] sm:$0xff]
    %v181 = vld [vmem:[%s63 + $0x170] sm:$0xff]
    %v182 = vld [vmem:[%s63 + $0x178] sm:$0xff]
    %v183 = vld [vmem:[%s63 + $0x180] sm:$0xff]
    %v184 = vld [vmem:[%s63 + $0x188] sm:$0xff]
    %v185 = vld [vmem:[%s63 + $0x190] sm:$0xff]
    %v186 = vld [vmem:[%s63 + $0x198] sm:$0xff]
    %v187 = vld [vmem:[%s63 + $0x1a0] sm:$0xff]
    %v188 = vld [vmem:[%s63 + $0x1a8] sm:$0xff]
    %v189 = vld [vmem:[%s63 + $0x1b0] sm:$0xff]
    %v190 = vld [vmem:[%s63 + $0x1b8] sm:$0xff]
    %v191 = vld [vmem:[%s63 + $0x1c0] sm:$0xff]
    %v192 = vld [vmem:[%s63 + $0x1c8] sm:$0xff]
    %v193 = vld [vmem:[%s63 + $0x1d0] sm:$0xff]
    %v194 = vld [vmem:[%s63 + $0x1d8] sm:$0xff]
    %v195 = vld [vmem:[%s63 + $0x1e0] sm:$0xff]
    %v196 = vld [vmem:[%s63 + $0x1e8] sm:$0xff]
    %v197 = vld [vmem:[%s63 + $0x1f0] sm:$0xff]
    %v198 = vld [vmem:[%s63 + $0x1f8] sm:$0xff]
    %v199 = vlaneseq
    %v200 = vand.u32 %v199, 127
    %201 = vset.pattern.permute.xlu0 0
    %202 = vperm.xlu0 %201, %v135
    %v203 = vpop.permute.xlu0 %202
    %204 = vset.pattern.permute.xlu0 0
    %205 = vperm.xlu0 %204, %v136
    %v206 = vpop.permute.xlu0 %205
    %207 = vset.pattern.permute.xlu0 0
    %208 = vperm.xlu0 %207, %v137
    %v209 = vpop.permute.xlu0 %208
    %210 = vset.pattern.permute.xlu0 0
    %211 = vperm.xlu0 %210, %v138
    %v212 = vpop.permute.xlu0 %211
    %213 = vset.pattern.permute.xlu0 0
    %214 = vperm.xlu0 %213, %v139
    %v215 = vpop.permute.xlu0 %214
    %216 = vset.pattern.permute.xlu0 0
    %217 = vperm.xlu0 %216, %v140
    %v218 = vpop.permute.xlu0 %217
    %219 = vset.pattern.permute.xlu0 0
    %220 = vperm.xlu0 %219, %v141
    %v221 = vpop.permute.xlu0 %220
    %222 = vset.pattern.permute.xlu0 0
    %223 = vperm.xlu0 %222, %v142
    %v224 = vpop.permute.xlu0 %223
    %225 = vset.pattern.permute.xlu0 0
    %226 = vperm.xlu0 %225, %v143
    %v227 = vpop.permute.xlu0 %226
    %228 = vset.pattern.permute.xlu0 0
    %229 = vperm.xlu0 %228, %v144
    %v230 = vpop.permute.xlu0 %229
    %231 = vset.pattern.permute.xlu0 0
    %232 = vperm.xlu0 %231, %v145
    %v233 = vpop.permute.xlu0 %232
    %234 = vset.pattern.permute.xlu0 0
    %235 = vperm.xlu0 %234, %v146
    %v236 = vpop.permute.xlu0 %235
    %237 = vset.pattern.permute.xlu0 0
    %238 = vperm.xlu0 %237, %v147
    %v239 = vpop.permute.xlu0 %238
    %240 = vset.pattern.permute.xlu0 0
    %241 = vperm.xlu0 %240, %v148
    %v242 = vpop.permute.xlu0 %241
    %243 = vset.pattern.permute.xlu0 0
    %244 = vperm.xlu0 %243, %v149
    %v245 = vpop.permute.xlu0 %244
    %246 = vset.pattern.permute.xlu0 0
    %247 = vperm.xlu0 %246, %v150
    %v248 = vpop.permute.xlu0 %247
    %249 = vset.pattern.permute.xlu0 0
    %250 = vperm.xlu0 %249, %v151
    %v251 = vpop.permute.xlu0 %250
    %252 = vset.pattern.permute.xlu0 0
    %253 = vperm.xlu0 %252, %v152
    %v254 = vpop.permute.xlu0 %253
    %255 = vset.pattern.permute.xlu0 0
    %256 = vperm.xlu0 %255, %v153
    %v257 = vpop.permute.xlu0 %256
    %258 = vset.pattern.permute.xlu0 0
    %259 = vperm.xlu0 %258, %v154
    %v260 = vpop.permute.xlu0 %259
    %261 = vset.pattern.permute.xlu0 0
    %262 = vperm.xlu0 %261, %v155
    %v263 = vpop.permute.xlu0 %262
    %264 = vset.pattern.permute.xlu0 0
    %265 = vperm.xlu0 %264, %v156
    %v266 = vpop.permute.xlu0 %265
    %267 = vset.pattern.permute.xlu0 0
    %268 = vperm.xlu0 %267, %v157
    %v269 = vpop.permute.xlu0 %268
    %270 = vset.pattern.permute.xlu0 0
    %271 = vperm.xlu0 %270, %v158
    %v272 = vpop.permute.xlu0 %271
    %273 = vset.pattern.permute.xlu0 0
    %274 = vperm.xlu0 %273, %v159
    %v275 = vpop.permute.xlu0 %274
    %276 = vset.pattern.permute.xlu0 0
    %277 = vperm.xlu0 %276, %v160
    %v278 = vpop.permute.xlu0 %277
    %279 = vset.pattern.permute.xlu0 0
    %280 = vperm.xlu0 %279, %v161
    %v281 = vpop.permute.xlu0 %280
    %282 = vset.pattern.permute.xlu0 0
    %283 = vperm.xlu0 %282, %v162
    %v284 = vpop.permute.xlu0 %283
    %285 = vset.pattern.permute.xlu0 0
    %286 = vperm.xlu0 %285, %v163
    %v287 = vpop.permute.xlu0 %286
    %288 = vset.pattern.permute.xlu0 0
    %289 = vperm.xlu0 %288, %v164
    %v290 = vpop.permute.xlu0 %289
    %291 = vset.pattern.permute.xlu0 0
    %292 = vperm.xlu0 %291, %v165
    %v293 = vpop.permute.xlu0 %292
    %294 = vset.pattern.permute.xlu0 0
    %295 = vperm.xlu0 %294, %v166
    %v296 = vpop.permute.xlu0 %295
    %297 = vset.pattern.permute.xlu0 0
    %298 = vperm.xlu0 %297, %v167
    %v299 = vpop.permute.xlu0 %298
    %300 = vset.pattern.permute.xlu0 0
    %301 = vperm.xlu0 %300, %v168
    %v302 = vpop.permute.xlu0 %301
    %303 = vset.pattern.permute.xlu0 0
    %304 = vperm.xlu0 %303, %v169
    %v305 = vpop.permute.xlu0 %304
    %306 = vset.pattern.permute.xlu0 0
    %307 = vperm.xlu0 %306, %v170
    %v308 = vpop.permute.xlu0 %307
    %309 = vset.pattern.permute.xlu0 0
    %310 = vperm.xlu0 %309, %v171
    %v311 = vpop.permute.xlu0 %310
    %312 = vset.pattern.permute.xlu0 0
    %313 = vperm.xlu0 %312, %v172
    %v314 = vpop.permute.xlu0 %313
    %315 = vset.pattern.permute.xlu0 0
    %316 = vperm.xlu0 %315, %v173
    %v317 = vpop.permute.xlu0 %316
    %318 = vset.pattern.permute.xlu0 0
    %319 = vperm.xlu0 %318, %v174
    %v320 = vpop.permute.xlu0 %319
    %321 = vset.pattern.permute.xlu0 0
    %322 = vperm.xlu0 %321, %v175
    %v323 = vpop.permute.xlu0 %322
    %324 = vset.pattern.permute.xlu0 0
    %325 = vperm.xlu0 %324, %v176
    %v326 = vpop.permute.xlu0 %325
    %327 = vset.pattern.permute.xlu0 0
    %328 = vperm.xlu0 %327, %v177
    %v329 = vpop.permute.xlu0 %328
    %330 = vset.pattern.permute.xlu0 0
    %331 = vperm.xlu0 %330, %v178
    %v332 = vpop.permute.xlu0 %331
    %333 = vset.pattern.permute.xlu0 0
    %334 = vperm.xlu0 %333, %v179
    %v335 = vpop.permute.xlu0 %334
    %336 = vset.pattern.permute.xlu0 0
    %337 = vperm.xlu0 %336, %v180
    %v338 = vpop.permute.xlu0 %337
    %339 = vset.pattern.permute.xlu0 0
    %340 = vperm.xlu0 %339, %v181
    %v341 = vpop.permute.xlu0 %340
    %342 = vset.pattern.permute.xlu0 0
    %343 = vperm.xlu0 %342, %v182
    %v344 = vpop.permute.xlu0 %343
    %345 = vset.pattern.permute.xlu0 0
    %346 = vperm.xlu0 %345, %v183
    %v347 = vpop.permute.xlu0 %346
    %348 = vset.pattern.permute.xlu0 0
    %349 = vperm.xlu0 %348, %v184
    %v350 = vpop.permute.xlu0 %349
    %351 = vset.pattern.permute.xlu0 0
    %352 = vperm.xlu0 %351, %v185
    %v353 = vpop.permute.xlu0 %352
    %354 = vset.pattern.permute.xlu0 0
    %355 = vperm.xlu0 %354, %v186
    %v356 = vpop.permute.xlu0 %355
    %357 = vset.pattern.permute.xlu0 0
    %358 = vperm.xlu0 %357, %v187
    %v359 = vpop.permute.xlu0 %358
    %360 = vset.pattern.permute.xlu0 0
    %361 = vperm.xlu0 %360, %v188
    %v362 = vpop.permute.xlu0 %361
    %363 = vset.pattern.permute.xlu0 0
    %364 = vperm.xlu0 %363, %v189
    %v365 = vpop.permute.xlu0 %364
    %366 = vset.pattern.permute.xlu0 0
    %367 = vperm.xlu0 %366, %v190
    %v368 = vpop.permute.xlu0 %367
    %369 = vset.pattern.permute.xlu0 0
    %370 = vperm.xlu0 %369, %v191
    %v371 = vpop.permute.xlu0 %370
    %372 = vset.pattern.permute.xlu0 0
    %373 = vperm.xlu0 %372, %v192
    %v374 = vpop.permute.xlu0 %373
    %375 = vset.pattern.permute.xlu0 0
    %376 = vperm.xlu0 %375, %v193
    %v377 = vpop.permute.xlu0 %376
    %378 = vset.pattern.permute.xlu0 0
    %379 = vperm.xlu0 %378, %v194
    %v380 = vpop.permute.xlu0 %379
    %381 = vset.pattern.permute.xlu0 0
    %382 = vperm.xlu0 %381, %v195
    %v383 = vpop.permute.xlu0 %382
    %384 = vset.pattern.permute.xlu0 0
    %385 = vperm.xlu0 %384, %v196
    %v386 = vpop.permute.xlu0 %385
    %387 = vset.pattern.permute.xlu0 0
    %388 = vperm.xlu0 %387, %v197
    %v389 = vpop.permute.xlu0 %388
    %390 = vset.pattern.permute.xlu0 0
    %391 = vperm.xlu0 %390, %v198
    %v392 = vpop.permute.xlu0 %391
    %vm393 = vcmp.eq.s32.totalorder %v200, %v203
    %vm394 = vcmp.eq.s32.totalorder %v200, %v206
    %vm395 = vcmp.eq.s32.totalorder %v200, %v209
    %vm396 = vcmp.eq.s32.totalorder %v200, %v212
    %vm397 = vcmp.eq.s32.totalorder %v200, %v215
    %vm398 = vcmp.eq.s32.totalorder %v200, %v218
    %vm399 = vcmp.eq.s32.totalorder %v200, %v221
    %vm400 = vcmp.eq.s32.totalorder %v200, %v224
    %vm401 = vcmp.eq.s32.totalorder %v200, %v227
    %vm402 = vcmp.eq.s32.totalorder %v200, %v230
    %vm403 = vcmp.eq.s32.totalorder %v200, %v233
    %vm404 = vcmp.eq.s32.totalorder %v200, %v236
    %vm405 = vcmp.eq.s32.totalorder %v200, %v239
    %vm406 = vcmp.eq.s32.totalorder %v200, %v242
    %vm407 = vcmp.eq.s32.totalorder %v200, %v245
    %vm408 = vcmp.eq.s32.totalorder %v200, %v248
    %vm409 = vcmp.eq.s32.totalorder %v200, %v251
    %vm410 = vcmp.eq.s32.totalorder %v200, %v254
    %vm411 = vcmp.eq.s32.totalorder %v200, %v257
    %vm412 = vcmp.eq.s32.totalorder %v200, %v260
    %vm413 = vcmp.eq.s32.totalorder %v200, %v263
    %vm414 = vcmp.eq.s32.totalorder %v200, %v266
    %vm415 = vcmp.eq.s32.totalorder %v200, %v269
    %vm416 = vcmp.eq.s32.totalorder %v200, %v272
    %vm417 = vcmp.eq.s32.totalorder %v200, %v275
    %vm418 = vcmp.eq.s32.totalorder %v200, %v278
    %vm419 = vcmp.eq.s32.totalorder %v200, %v281
    %vm420 = vcmp.eq.s32.totalorder %v200, %v284
    %vm421 = vcmp.eq.s32.totalorder %v200, %v287
    %vm422 = vcmp.eq.s32.totalorder %v200, %v290
    %vm423 = vcmp.eq.s32.totalorder %v200, %v293
    %vm424 = vcmp.eq.s32.totalorder %v200, %v296
    %vm425 = vcmp.eq.s32.totalorder %v200, %v299
    %vm426 = vcmp.eq.s32.totalorder %v200, %v302
    %vm427 = vcmp.eq.s32.totalorder %v200, %v305
    %vm428 = vcmp.eq.s32.totalorder %v200, %v308
    %vm429 = vcmp.eq.s32.totalorder %v200, %v311
    %vm430 = vcmp.eq.s32.totalorder %v200, %v314
    %vm431 = vcmp.eq.s32.totalorder %v200, %v317
    %vm432 = vcmp.eq.s32.totalorder %v200, %v320
    %vm433 = vcmp.eq.s32.totalorder %v200, %v323
    %vm434 = vcmp.eq.s32.totalorder %v200, %v326
    %vm435 = vcmp.eq.s32.totalorder %v200, %v329
    %vm436 = vcmp.eq.s32.totalorder %v200, %v332
    %vm437 = vcmp.eq.s32.totalorder %v200, %v335
    %vm438 = vcmp.eq.s32.totalorder %v200, %v338
    %vm439 = vcmp.eq.s32.totalorder %v200, %v341
    %vm440 = vcmp.eq.s32.totalorder %v200, %v344
    %vm441 = vcmp.eq.s32.totalorder %v200, %v347
    %vm442 = vcmp.eq.s32.totalorder %v200, %v350
    %vm443 = vcmp.eq.s32.totalorder %v200, %v353
    %vm444 = vcmp.eq.s32.totalorder %v200, %v356
    %vm445 = vcmp.eq.s32.totalorder %v200, %v359
    %vm446 = vcmp.eq.s32.totalorder %v200, %v362
    %vm447 = vcmp.eq.s32.totalorder %v200, %v365
    %vm448 = vcmp.eq.s32.totalorder %v200, %v368
    %vm449 = vcmp.eq.s32.totalorder %v200, %v371
    %vm450 = vcmp.eq.s32.totalorder %v200, %v374
    %vm451 = vcmp.eq.s32.totalorder %v200, %v377
    %vm452 = vcmp.eq.s32.totalorder %v200, %v380
    %vm453 = vcmp.eq.s32.totalorder %v200, %v383
    %vm454 = vcmp.eq.s32.totalorder %v200, %v386
    %vm455 = vcmp.eq.s32.totalorder %v200, %v389
    %vm456 = vcmp.eq.s32.totalorder %v200, %v392
    %vm457 = vcmp.ne.s32.totalorder %v135, 4294967295
    %vm458 = vcmp.ne.s32.totalorder %v136, 4294967295
    %vm459 = vcmp.ne.s32.totalorder %v137, 4294967295
    %vm460 = vcmp.ne.s32.totalorder %v138, 4294967295
    %vm461 = vcmp.ne.s32.totalorder %v139, 4294967295
    %vm462 = vcmp.ne.s32.totalorder %v140, 4294967295
    %vm463 = vcmp.ne.s32.totalorder %v141, 4294967295
    %vm464 = vcmp.ne.s32.totalorder %v142, 4294967295
    %vm465 = vcmp.ne.s32.totalorder %v143, 4294967295
    %vm466 = vcmp.ne.s32.totalorder %v144, 4294967295
    %vm467 = vcmp.ne.s32.totalorder %v145, 4294967295
    %vm468 = vcmp.ne.s32.totalorder %v146, 4294967295
    %vm469 = vcmp.ne.s32.totalorder %v147, 4294967295
    %vm470 = vcmp.ne.s32.totalorder %v148, 4294967295
    %vm471 = vcmp.ne.s32.totalorder %v149, 4294967295
    %vm472 = vcmp.ne.s32.totalorder %v150, 4294967295
    %vm473 = vcmp.ne.s32.totalorder %v151, 4294967295
    %vm474 = vcmp.ne.s32.totalorder %v152, 4294967295
    %vm475 = vcmp.ne.s32.totalorder %v153, 4294967295
    %vm476 = vcmp.ne.s32.totalorder %v154, 4294967295
    %vm477 = vcmp.ne.s32.totalorder %v155, 4294967295
    %vm478 = vcmp.ne.s32.totalorder %v156, 4294967295
    %vm479 = vcmp.ne.s32.totalorder %v157, 4294967295
    %vm480 = vcmp.ne.s32.totalorder %v158, 4294967295
    %vm481 = vcmp.ne.s32.totalorder %v159, 4294967295
    %vm482 = vcmp.ne.s32.totalorder %v160, 4294967295
    %vm483 = vcmp.ne.s32.totalorder %v161, 4294967295
    %vm484 = vcmp.ne.s32.totalorder %v162, 4294967295
    %vm485 = vcmp.ne.s32.totalorder %v163, 4294967295
    %vm486 = vcmp.ne.s32.totalorder %v164, 4294967295
    %vm487 = vcmp.ne.s32.totalorder %v165, 4294967295
    %vm488 = vcmp.ne.s32.totalorder %v166, 4294967295
    %vm489 = vcmp.ne.s32.totalorder %v167, 4294967295
    %vm490 = vcmp.ne.s32.totalorder %v168, 4294967295
    %vm491 = vcmp.ne.s32.totalorder %v169, 4294967295
    %vm492 = vcmp.ne.s32.totalorder %v170, 4294967295
    %vm493 = vcmp.ne.s32.totalorder %v171, 4294967295
    %vm494 = vcmp.ne.s32.totalorder %v172, 4294967295
    %vm495 = vcmp.ne.s32.totalorder %v173, 4294967295
    %vm496 = vcmp.ne.s32.totalorder %v174, 4294967295
    %vm497 = vcmp.ne.s32.totalorder %v175, 4294967295
    %vm498 = vcmp.ne.s32.totalorder %v176, 4294967295
    %vm499 = vcmp.ne.s32.totalorder %v177, 4294967295
    %vm500 = vcmp.ne.s32.totalorder %v178, 4294967295
    %vm501 = vcmp.ne.s32.totalorder %v179, 4294967295
    %vm502 = vcmp.ne.s32.totalorder %v180, 4294967295
    %vm503 = vcmp.ne.s32.totalorder %v181, 4294967295
    %vm504 = vcmp.ne.s32.totalorder %v182, 4294967295
    %vm505 = vcmp.ne.s32.totalorder %v183, 4294967295
    %vm506 = vcmp.ne.s32.totalorder %v184, 4294967295
    %vm507 = vcmp.ne.s32.totalorder %v185, 4294967295
    %vm508 = vcmp.ne.s32.totalorder %v186, 4294967295
    %vm509 = vcmp.ne.s32.totalorder %v187, 4294967295
    %vm510 = vcmp.ne.s32.totalorder %v188, 4294967295
    %vm511 = vcmp.ne.s32.totalorder %v189, 4294967295
    %vm512 = vcmp.ne.s32.totalorder %v190, 4294967295
    %vm513 = vcmp.ne.s32.totalorder %v191, 4294967295
    %vm514 = vcmp.ne.s32.totalorder %v192, 4294967295
    %vm515 = vcmp.ne.s32.totalorder %v193, 4294967295
    %vm516 = vcmp.ne.s32.totalorder %v194, 4294967295
    %vm517 = vcmp.ne.s32.totalorder %v195, 4294967295
    %vm518 = vcmp.ne.s32.totalorder %v196, 4294967295
    %vm519 = vcmp.ne.s32.totalorder %v197, 4294967295
    %vm520 = vcmp.ne.s32.totalorder %v198, 4294967295
    %v521 = vsel %vm457, 1, 0
    %v522 = vsel %vm458, 1, 0
    %v523 = vsel %vm459, 1, 0
    %v524 = vsel %vm460, 1, 0
    %v525 = vsel %vm461, 1, 0
    %v526 = vsel %vm462, 1, 0
    %v527 = vsel %vm463, 1, 0
    %v528 = vsel %vm464, 1, 0
    %v529 = vsel %vm465, 1, 0
    %v530 = vsel %vm466, 1, 0
    %v531 = vsel %vm467, 1, 0
    %v532 = vsel %vm468, 1, 0
    %v533 = vsel %vm469, 1, 0
    %v534 = vsel %vm470, 1, 0
    %v535 = vsel %vm471, 1, 0
    %v536 = vsel %vm472, 1, 0
    %v537 = vsel %vm473, 1, 0
    %v538 = vsel %vm474, 1, 0
    %v539 = vsel %vm475, 1, 0
    %v540 = vsel %vm476, 1, 0
    %v541 = vsel %vm477, 1, 0
    %v542 = vsel %vm478, 1, 0
    %v543 = vsel %vm479, 1, 0
    %v544 = vsel %vm480, 1, 0
    %v545 = vsel %vm481, 1, 0
    %v546 = vsel %vm482, 1, 0
    %v547 = vsel %vm483, 1, 0
    %v548 = vsel %vm484, 1, 0
    %v549 = vsel %vm485, 1, 0
    %v550 = vsel %vm486, 1, 0
    %v551 = vsel %vm487, 1, 0
    %v552 = vsel %vm488, 1, 0
    %v553 = vsel %vm489, 1, 0
    %v554 = vsel %vm490, 1, 0
    %v555 = vsel %vm491, 1, 0
    %v556 = vsel %vm492, 1, 0
    %v557 = vsel %vm493, 1, 0
    %v558 = vsel %vm494, 1, 0
    %v559 = vsel %vm495, 1, 0
    %v560 = vsel %vm496, 1, 0
    %v561 = vsel %vm497, 1, 0
    %v562 = vsel %vm498, 1, 0
    %v563 = vsel %vm499, 1, 0
    %v564 = vsel %vm500, 1, 0
    %v565 = vsel %vm501, 1, 0
    %v566 = vsel %vm502, 1, 0
    %v567 = vsel %vm503, 1, 0
    %v568 = vsel %vm504, 1, 0
    %v569 = vsel %vm505, 1, 0
    %v570 = vsel %vm506, 1, 0
    %v571 = vsel %vm507, 1, 0
    %v572 = vsel %vm508, 1, 0
    %v573 = vsel %vm509, 1, 0
    %v574 = vsel %vm510, 1, 0
    %v575 = vsel %vm511, 1, 0
    %v576 = vsel %vm512, 1, 0
    %v577 = vsel %vm513, 1, 0
    %v578 = vsel %vm514, 1, 0
    %v579 = vsel %vm515, 1, 0
    %v580 = vsel %vm516, 1, 0
    %v581 = vsel %vm517, 1, 0
    %v582 = vsel %vm518, 1, 0
    %v583 = vsel %vm519, 1, 0
    %v584 = vsel %vm520, 1, 0
    %585 = vset.pattern.permute.xlu0 0
    %586 = vperm.xlu0 %585, %v521
    %v587 = vpop.permute.xlu0 %586
    %588 = vset.pattern.permute.xlu0 0
    %589 = vperm.xlu0 %588, %v522
    %v590 = vpop.permute.xlu0 %589
    %591 = vset.pattern.permute.xlu0 0
    %592 = vperm.xlu0 %591, %v523
    %v593 = vpop.permute.xlu0 %592
    %594 = vset.pattern.permute.xlu0 0
    %595 = vperm.xlu0 %594, %v524
    %v596 = vpop.permute.xlu0 %595
    %597 = vset.pattern.permute.xlu0 0
    %598 = vperm.xlu0 %597, %v525
    %v599 = vpop.permute.xlu0 %598
    %600 = vset.pattern.permute.xlu0 0
    %601 = vperm.xlu0 %600, %v526
    %v602 = vpop.permute.xlu0 %601
    %603 = vset.pattern.permute.xlu0 0
    %604 = vperm.xlu0 %603, %v527
    %v605 = vpop.permute.xlu0 %604
    %606 = vset.pattern.permute.xlu0 0
    %607 = vperm.xlu0 %606, %v528
    %v608 = vpop.permute.xlu0 %607
    %609 = vset.pattern.permute.xlu0 0
    %610 = vperm.xlu0 %609, %v529
    %v611 = vpop.permute.xlu0 %610
    %612 = vset.pattern.permute.xlu0 0
    %613 = vperm.xlu0 %612, %v530
    %v614 = vpop.permute.xlu0 %613
    %615 = vset.pattern.permute.xlu0 0
    %616 = vperm.xlu0 %615, %v531
    %v617 = vpop.permute.xlu0 %616
    %618 = vset.pattern.permute.xlu0 0
    %619 = vperm.xlu0 %618, %v532
    %v620 = vpop.permute.xlu0 %619
    %621 = vset.pattern.permute.xlu0 0
    %622 = vperm.xlu0 %621, %v533
    %v623 = vpop.permute.xlu0 %622
    %624 = vset.pattern.permute.xlu0 0
    %625 = vperm.xlu0 %624, %v534
    %v626 = vpop.permute.xlu0 %625
    %627 = vset.pattern.permute.xlu0 0
    %628 = vperm.xlu0 %627, %v535
    %v629 = vpop.permute.xlu0 %628
    %630 = vset.pattern.permute.xlu0 0
    %631 = vperm.xlu0 %630, %v536
    %v632 = vpop.permute.xlu0 %631
    %633 = vset.pattern.permute.xlu0 0
    %634 = vperm.xlu0 %633, %v537
    %v635 = vpop.permute.xlu0 %634
    %636 = vset.pattern.permute.xlu0 0
    %637 = vperm.xlu0 %636, %v538
    %v638 = vpop.permute.xlu0 %637
    %639 = vset.pattern.permute.xlu0 0
    %640 = vperm.xlu0 %639, %v539
    %v641 = vpop.permute.xlu0 %640
    %642 = vset.pattern.permute.xlu0 0
    %643 = vperm.xlu0 %642, %v540
    %v644 = vpop.permute.xlu0 %643
    %645 = vset.pattern.permute.xlu0 0
    %646 = vperm.xlu0 %645, %v541
    %v647 = vpop.permute.xlu0 %646
    %648 = vset.pattern.permute.xlu0 0
    %649 = vperm.xlu0 %648, %v542
    %v650 = vpop.permute.xlu0 %649
    %651 = vset.pattern.permute.xlu0 0
    %652 = vperm.xlu0 %651, %v543
    %v653 = vpop.permute.xlu0 %652
    %654 = vset.pattern.permute.xlu0 0
    %655 = vperm.xlu0 %654, %v544
    %v656 = vpop.permute.xlu0 %655
    %657 = vset.pattern.permute.xlu0 0
    %658 = vperm.xlu0 %657, %v545
    %v659 = vpop.permute.xlu0 %658
    %660 = vset.pattern.permute.xlu0 0
    %661 = vperm.xlu0 %660, %v546
    %v662 = vpop.permute.xlu0 %661
    %663 = vset.pattern.permute.xlu0 0
    %664 = vperm.xlu0 %663, %v547
    %v665 = vpop.permute.xlu0 %664
    %666 = vset.pattern.permute.xlu0 0
    %667 = vperm.xlu0 %666, %v548
    %v668 = vpop.permute.xlu0 %667
    %669 = vset.pattern.permute.xlu0 0
    %670 = vperm.xlu0 %669, %v549
    %v671 = vpop.permute.xlu0 %670
    %672 = vset.pattern.permute.xlu0 0
    %673 = vperm.xlu0 %672, %v550
    %v674 = vpop.permute.xlu0 %673
    %675 = vset.pattern.permute.xlu0 0
    %676 = vperm.xlu0 %675, %v551
    %v677 = vpop.permute.xlu0 %676
    %678 = vset.pattern.permute.xlu0 0
    %679 = vperm.xlu0 %678, %v552
    %v680 = vpop.permute.xlu0 %679
    %681 = vset.pattern.permute.xlu0 0
    %682 = vperm.xlu0 %681, %v553
    %v683 = vpop.permute.xlu0 %682
    %684 = vset.pattern.permute.xlu0 0
    %685 = vperm.xlu0 %684, %v554
    %v686 = vpop.permute.xlu0 %685
    %687 = vset.pattern.permute.xlu0 0
    %688 = vperm.xlu0 %687, %v555
    %v689 = vpop.permute.xlu0 %688
    %690 = vset.pattern.permute.xlu0 0
    %691 = vperm.xlu0 %690, %v556
    %v692 = vpop.permute.xlu0 %691
    %693 = vset.pattern.permute.xlu0 0
    %694 = vperm.xlu0 %693, %v557
    %v695 = vpop.permute.xlu0 %694
    %696 = vset.pattern.permute.xlu0 0
    %697 = vperm.xlu0 %696, %v558
    %v698 = vpop.permute.xlu0 %697
    %699 = vset.pattern.permute.xlu0 0
    %700 = vperm.xlu0 %699, %v559
    %v701 = vpop.permute.xlu0 %700
    %702 = vset.pattern.permute.xlu0 0
    %703 = vperm.xlu0 %702, %v560
    %v704 = vpop.permute.xlu0 %703
    %705 = vset.pattern.permute.xlu0 0
    %706 = vperm.xlu0 %705, %v561
    %v707 = vpop.permute.xlu0 %706
    %708 = vset.pattern.permute.xlu0 0
    %709 = vperm.xlu0 %708, %v562
    %v710 = vpop.permute.xlu0 %709
    %711 = vset.pattern.permute.xlu0 0
    %712 = vperm.xlu0 %711, %v563
    %v713 = vpop.permute.xlu0 %712
    %714 = vset.pattern.permute.xlu0 0
    %715 = vperm.xlu0 %714, %v564
    %v716 = vpop.permute.xlu0 %715
    %717 = vset.pattern.permute.xlu0 0
    %718 = vperm.xlu0 %717, %v565
    %v719 = vpop.permute.xlu0 %718
    %720 = vset.pattern.permute.xlu0 0
    %721 = vperm.xlu0 %720, %v566
    %v722 = vpop.permute.xlu0 %721
    %723 = vset.pattern.permute.xlu0 0
    %724 = vperm.xlu0 %723, %v567
    %v725 = vpop.permute.xlu0 %724
    %726 = vset.pattern.permute.xlu0 0
    %727 = vperm.xlu0 %726, %v568
    %v728 = vpop.permute.xlu0 %727
    %729 = vset.pattern.permute.xlu0 0
    %730 = vperm.xlu0 %729, %v569
    %v731 = vpop.permute.xlu0 %730
    %732 = vset.pattern.permute.xlu0 0
    %733 = vperm.xlu0 %732, %v570
    %v734 = vpop.permute.xlu0 %733
    %735 = vset.pattern.permute.xlu0 0
    %736 = vperm.xlu0 %735, %v571
    %v737 = vpop.permute.xlu0 %736
    %738 = vset.pattern.permute.xlu0 0
    %739 = vperm.xlu0 %738, %v572
    %v740 = vpop.permute.xlu0 %739
    %741 = vset.pattern.permute.xlu0 0
    %742 = vperm.xlu0 %741, %v573
    %v743 = vpop.permute.xlu0 %742
    %744 = vset.pattern.permute.xlu0 0
    %745 = vperm.xlu0 %744, %v574
    %v746 = vpop.permute.xlu0 %745
    %747 = vset.pattern.permute.xlu0 0
    %748 = vperm.xlu0 %747, %v575
    %v749 = vpop.permute.xlu0 %748
    %750 = vset.pattern.permute.xlu0 0
    %751 = vperm.xlu0 %750, %v576
    %v752 = vpop.permute.xlu0 %751
    %753 = vset.pattern.permute.xlu0 0
    %754 = vperm.xlu0 %753, %v577
    %v755 = vpop.permute.xlu0 %754
    %756 = vset.pattern.permute.xlu0 0
    %757 = vperm.xlu0 %756, %v578
    %v758 = vpop.permute.xlu0 %757
    %759 = vset.pattern.permute.xlu0 0
    %760 = vperm.xlu0 %759, %v579
    %v761 = vpop.permute.xlu0 %760
    %762 = vset.pattern.permute.xlu0 0
    %763 = vperm.xlu0 %762, %v580
    %v764 = vpop.permute.xlu0 %763
    %765 = vset.pattern.permute.xlu0 0
    %766 = vperm.xlu0 %765, %v581
    %v767 = vpop.permute.xlu0 %766
    %768 = vset.pattern.permute.xlu0 0
    %769 = vperm.xlu0 %768, %v582
    %v770 = vpop.permute.xlu0 %769
    %771 = vset.pattern.permute.xlu0 0
    %772 = vperm.xlu0 %771, %v583
    %v773 = vpop.permute.xlu0 %772
    %774 = vset.pattern.permute.xlu0 0
    %775 = vperm.xlu0 %774, %v584
    %v776 = vpop.permute.xlu0 %775
    %vm777 = vcmp.eq.s32.totalorder %v587, 1
    %vm778 = vcmp.eq.s32.totalorder %v590, 1
    %vm779 = vcmp.eq.s32.totalorder %v593, 1
    %vm780 = vcmp.eq.s32.totalorder %v596, 1
    %vm781 = vcmp.eq.s32.totalorder %v599, 1
    %vm782 = vcmp.eq.s32.totalorder %v602, 1
    %vm783 = vcmp.eq.s32.totalorder %v605, 1
    %vm784 = vcmp.eq.s32.totalorder %v608, 1
    %vm785 = vcmp.eq.s32.totalorder %v611, 1
    %vm786 = vcmp.eq.s32.totalorder %v614, 1
    %vm787 = vcmp.eq.s32.totalorder %v617, 1
    %vm788 = vcmp.eq.s32.totalorder %v620, 1
    %vm789 = vcmp.eq.s32.totalorder %v623, 1
    %vm790 = vcmp.eq.s32.totalorder %v626, 1
    %vm791 = vcmp.eq.s32.totalorder %v629, 1
    %vm792 = vcmp.eq.s32.totalorder %v632, 1
    %vm793 = vcmp.eq.s32.totalorder %v635, 1
    %vm794 = vcmp.eq.s32.totalorder %v638, 1
    %vm795 = vcmp.eq.s32.totalorder %v641, 1
    %vm796 = vcmp.eq.s32.totalorder %v644, 1
    %vm797 = vcmp.eq.s32.totalorder %v647, 1
    %vm798 = vcmp.eq.s32.totalorder %v650, 1
    %vm799 = vcmp.eq.s32.totalorder %v653, 1
    %vm800 = vcmp.eq.s32.totalorder %v656, 1
    %vm801 = vcmp.eq.s32.totalorder %v659, 1
    %vm802 = vcmp.eq.s32.totalorder %v662, 1
    %vm803 = vcmp.eq.s32.totalorder %v665, 1
    %vm804 = vcmp.eq.s32.totalorder %v668, 1
    %vm805 = vcmp.eq.s32.totalorder %v671, 1
    %vm806 = vcmp.eq.s32.totalorder %v674, 1
    %vm807 = vcmp.eq.s32.totalorder %v677, 1
    %vm808 = vcmp.eq.s32.totalorder %v680, 1
    %vm809 = vcmp.eq.s32.totalorder %v683, 1
    %vm810 = vcmp.eq.s32.totalorder %v686, 1
    %vm811 = vcmp.eq.s32.totalorder %v689, 1
    %vm812 = vcmp.eq.s32.totalorder %v692, 1
    %vm813 = vcmp.eq.s32.totalorder %v695, 1
    %vm814 = vcmp.eq.s32.totalorder %v698, 1
    %vm815 = vcmp.eq.s32.totalorder %v701, 1
    %vm816 = vcmp.eq.s32.totalorder %v704, 1
    %vm817 = vcmp.eq.s32.totalorder %v707, 1
    %vm818 = vcmp.eq.s32.totalorder %v710, 1
    %vm819 = vcmp.eq.s32.totalorder %v713, 1
    %vm820 = vcmp.eq.s32.totalorder %v716, 1
    %vm821 = vcmp.eq.s32.totalorder %v719, 1
    %vm822 = vcmp.eq.s32.totalorder %v722, 1
    %vm823 = vcmp.eq.s32.totalorder %v725, 1
    %vm824 = vcmp.eq.s32.totalorder %v728, 1
    %vm825 = vcmp.eq.s32.totalorder %v731, 1
    %vm826 = vcmp.eq.s32.totalorder %v734, 1
    %vm827 = vcmp.eq.s32.totalorder %v737, 1
    %vm828 = vcmp.eq.s32.totalorder %v740, 1
    %vm829 = vcmp.eq.s32.totalorder %v743, 1
    %vm830 = vcmp.eq.s32.totalorder %v746, 1
    %vm831 = vcmp.eq.s32.totalorder %v749, 1
    %vm832 = vcmp.eq.s32.totalorder %v752, 1
    %vm833 = vcmp.eq.s32.totalorder %v755, 1
    %vm834 = vcmp.eq.s32.totalorder %v758, 1
    %vm835 = vcmp.eq.s32.totalorder %v761, 1
    %vm836 = vcmp.eq.s32.totalorder %v764, 1
    %vm837 = vcmp.eq.s32.totalorder %v767, 1
    %vm838 = vcmp.eq.s32.totalorder %v770, 1
    %vm839 = vcmp.eq.s32.totalorder %v773, 1
    %vm840 = vcmp.eq.s32.totalorder %v776, 1
    %vm841 = vmand %vm393, %vm777
    %vm842 = vmand %vm394, %vm778
    %vm843 = vmand %vm395, %vm779
    %vm844 = vmand %vm396, %vm780
    %vm845 = vmand %vm397, %vm781
    %vm846 = vmand %vm398, %vm782
    %vm847 = vmand %vm399, %vm783
    %vm848 = vmand %vm400, %vm784
    %vm849 = vmand %vm401, %vm785
    %vm850 = vmand %vm402, %vm786
    %vm851 = vmand %vm403, %vm787
    %vm852 = vmand %vm404, %vm788
    %vm853 = vmand %vm405, %vm789
    %vm854 = vmand %vm406, %vm790
    %vm855 = vmand %vm407, %vm791
    %vm856 = vmand %vm408, %vm792
    %vm857 = vmand %vm409, %vm793
    %vm858 = vmand %vm410, %vm794
    %vm859 = vmand %vm411, %vm795
    %vm860 = vmand %vm412, %vm796
    %vm861 = vmand %vm413, %vm797
    %vm862 = vmand %vm414, %vm798
    %vm863 = vmand %vm415, %vm799
    %vm864 = vmand %vm416, %vm800
    %vm865 = vmand %vm417, %vm801
    %vm866 = vmand %vm418, %vm802
    %vm867 = vmand %vm419, %vm803
    %vm868 = vmand %vm420, %vm804
    %vm869 = vmand %vm421, %vm805
    %vm870 = vmand %vm422, %vm806
    %vm871 = vmand %vm423, %vm807
    %vm872 = vmand %vm424, %vm808
    %vm873 = vmand %vm425, %vm809
    %vm874 = vmand %vm426, %vm810
    %vm875 = vmand %vm427, %vm811
    %vm876 = vmand %vm428, %vm812
    %vm877 = vmand %vm429, %vm813
    %vm878 = vmand %vm430, %vm814
    %vm879 = vmand %vm431, %vm815
    %vm880 = vmand %vm432, %vm816
    %vm881 = vmand %vm433, %vm817
    %vm882 = vmand %vm434, %vm818
    %vm883 = vmand %vm435, %vm819
    %vm884 = vmand %vm436, %vm820
    %vm885 = vmand %vm437, %vm821
    %vm886 = vmand %vm438, %vm822
    %vm887 = vmand %vm439, %vm823
    %vm888 = vmand %vm440, %vm824
    %vm889 = vmand %vm441, %vm825
    %vm890 = vmand %vm442, %vm826
    %vm891 = vmand %vm443, %vm827
    %vm892 = vmand %vm444, %vm828
    %vm893 = vmand %vm445, %vm829
    %vm894 = vmand %vm446, %vm830
    %vm895 = vmand %vm447, %vm831
    %vm896 = vmand %vm448, %vm832
    %vm897 = vmand %vm449, %vm833
    %vm898 = vmand %vm450, %vm834
    %vm899 = vmand %vm451, %vm835
    %vm900 = vmand %vm452, %vm836
    %vm901 = vmand %vm453, %vm837
    %vm902 = vmand %vm454, %vm838
    %vm903 = vmand %vm455, %vm839
    %vm904 = vmand %vm456, %vm840
    %v905 = vsub.f32 1.0, %v71
    %v906 = vsub.f32 1.0, %v72
    %v907 = vsub.f32 1.0, %v73
    %v908 = vsub.f32 1.0, %v74
    %v909 = vsub.f32 1.0, %v75
    %v910 = vsub.f32 1.0, %v76
    %v911 = vsub.f32 1.0, %v77
    %v912 = vsub.f32 1.0, %v78
    %v913 = vsub.f32 1.0, %v79
    %v914 = vsub.f32 1.0, %v80
    %v915 = vsub.f32 1.0, %v81
    %v916 = vsub.f32 1.0, %v82
    %v917 = vsub.f32 1.0, %v83
    %v918 = vsub.f32 1.0, %v84
    %v919 = vsub.f32 1.0, %v85
    %v920 = vsub.f32 1.0, %v86
    %v921 = vsub.f32 1.0, %v87
    %v922 = vsub.f32 1.0, %v88
    %v923 = vsub.f32 1.0, %v89
    %v924 = vsub.f32 1.0, %v90
    %v925 = vsub.f32 1.0, %v91
    %v926 = vsub.f32 1.0, %v92
    %v927 = vsub.f32 1.0, %v93
    %v928 = vsub.f32 1.0, %v94
    %v929 = vsub.f32 1.0, %v95
    %v930 = vsub.f32 1.0, %v96
    %v931 = vsub.f32 1.0, %v97
    %v932 = vsub.f32 1.0, %v98
    %v933 = vsub.f32 1.0, %v99
    %v934 = vsub.f32 1.0, %v100
    %v935 = vsub.f32 1.0, %v101
    %v936 = vsub.f32 1.0, %v102
    %v937 = vsub.f32 1.0, %v103
    %v938 = vsub.f32 1.0, %v104
    %v939 = vsub.f32 1.0, %v105
    %v940 = vsub.f32 1.0, %v106
    %v941 = vsub.f32 1.0, %v107
    %v942 = vsub.f32 1.0, %v108
    %v943 = vsub.f32 1.0, %v109
    %v944 = vsub.f32 1.0, %v110
    %v945 = vsub.f32 1.0, %v111
    %v946 = vsub.f32 1.0, %v112
    %v947 = vsub.f32 1.0, %v113
    %v948 = vsub.f32 1.0, %v114
    %v949 = vsub.f32 1.0, %v115
    %v950 = vsub.f32 1.0, %v116
    %v951 = vsub.f32 1.0, %v117
    %v952 = vsub.f32 1.0, %v118
    %v953 = vsub.f32 1.0, %v119
    %v954 = vsub.f32 1.0, %v120
    %v955 = vsub.f32 1.0, %v121
    %v956 = vsub.f32 1.0, %v122
    %v957 = vsub.f32 1.0, %v123
    %v958 = vsub.f32 1.0, %v124
    %v959 = vsub.f32 1.0, %v125
    %v960 = vsub.f32 1.0, %v126
    %v961 = vsub.f32 1.0, %v127
    %v962 = vsub.f32 1.0, %v128
    %v963 = vsub.f32 1.0, %v129
    %v964 = vsub.f32 1.0, %v130
    %v965 = vsub.f32 1.0, %v131
    %v966 = vsub.f32 1.0, %v132
    %v967 = vsub.f32 1.0, %v133
    %v968 = vsub.f32 1.0, %v134
    %v969 = vsel %vm841, %v905, 0.0
    %v970 = vsel %vm842, %v906, 0.0
    %v971 = vsel %vm843, %v907, 0.0
    %v972 = vsel %vm844, %v908, 0.0
    %v973 = vsel %vm845, %v909, 0.0
    %v974 = vsel %vm846, %v910, 0.0
    %v975 = vsel %vm847, %v911, 0.0
    %v976 = vsel %vm848, %v912, 0.0
    %v977 = vsel %vm849, %v913, 0.0
    %v978 = vsel %vm850, %v914, 0.0
    %v979 = vsel %vm851, %v915, 0.0
    %v980 = vsel %vm852, %v916, 0.0
    %v981 = vsel %vm853, %v917, 0.0
    %v982 = vsel %vm854, %v918, 0.0
    %v983 = vsel %vm855, %v919, 0.0
    %v984 = vsel %vm856, %v920, 0.0
    %v985 = vsel %vm857, %v921, 0.0
    %v986 = vsel %vm858, %v922, 0.0
    %v987 = vsel %vm859, %v923, 0.0
    %v988 = vsel %vm860, %v924, 0.0
    %v989 = vsel %vm861, %v925, 0.0
    %v990 = vsel %vm862, %v926, 0.0
    %v991 = vsel %vm863, %v927, 0.0
    %v992 = vsel %vm864, %v928, 0.0
    %v993 = vsel %vm865, %v929, 0.0
    %v994 = vsel %vm866, %v930, 0.0
    %v995 = vsel %vm867, %v931, 0.0
    %v996 = vsel %vm868, %v932, 0.0
    %v997 = vsel %vm869, %v933, 0.0
    %v998 = vsel %vm870, %v934, 0.0
    %v999 = vsel %vm871, %v935, 0.0
    %v1000 = vsel %vm872, %v936, 0.0
    %v1001 = vsel %vm873, %v937, 0.0
    %v1002 = vsel %vm874, %v938, 0.0
    %v1003 = vsel %vm875, %v939, 0.0
    %v1004 = vsel %vm876, %v940, 0.0
    %v1005 = vsel %vm877, %v941, 0.0
    %v1006 = vsel %vm878, %v942, 0.0
    %v1007 = vsel %vm879, %v943, 0.0
    %v1008 = vsel %vm880, %v944, 0.0
    %v1009 = vsel %vm881, %v945, 0.0
    %v1010 = vsel %vm882, %v946, 0.0
    %v1011 = vsel %vm883, %v947, 0.0
    %v1012 = vsel %vm884, %v948, 0.0
    %v1013 = vsel %vm885, %v949, 0.0
    %v1014 = vsel %vm886, %v950, 0.0
    %v1015 = vsel %vm887, %v951, 0.0
    %v1016 = vsel %vm888, %v952, 0.0
    %v1017 = vsel %vm889, %v953, 0.0
    %v1018 = vsel %vm890, %v954, 0.0
    %v1019 = vsel %vm891, %v955, 0.0
    %v1020 = vsel %vm892, %v956, 0.0
    %v1021 = vsel %vm893, %v957, 0.0
    %v1022 = vsel %vm894, %v958, 0.0
    %v1023 = vsel %vm895, %v959, 0.0
    %v1024 = vsel %vm896, %v960, 0.0
    %v1025 = vsel %vm897, %v961, 0.0
    %v1026 = vsel %vm898, %v962, 0.0
    %v1027 = vsel %vm899, %v963, 0.0
    %v1028 = vsel %vm900, %v964, 0.0
    %v1029 = vsel %vm901, %v965, 0.0
    %v1030 = vsel %vm902, %v966, 0.0
    %v1031 = vsel %vm903, %v967, 0.0
    %v1032 = vsel %vm904, %v968, 0.0
    %v1033 = vld [vmem:[#allocation2] sm:$0x1]
    %v1034 = vmul.f32 %v969, %v969
    %v1035 = vmul.f32 %v970, %v970
    %v1036 = vmul.f32 %v971, %v971
    %v1037 = vmul.f32 %v972, %v972
    %v1038 = vmul.f32 %v973, %v973
    %v1039 = vmul.f32 %v974, %v974
    %v1040 = vmul.f32 %v975, %v975
    %v1041 = vmul.f32 %v976, %v976
    %v1042 = vmul.f32 %v977, %v977
    %v1043 = vmul.f32 %v978, %v978
    %v1044 = vmul.f32 %v979, %v979
    %v1045 = vmul.f32 %v980, %v980
    %v1046 = vmul.f32 %v981, %v981
    %v1047 = vmul.f32 %v982, %v982
    %v1048 = vmul.f32 %v983, %v983
    %v1049 = vmul.f32 %v984, %v984
    %v1050 = vmul.f32 %v985, %v985
    %v1051 = vmul.f32 %v986, %v986
    %v1052 = vmul.f32 %v987, %v987
    %v1053 = vmul.f32 %v988, %v988
    %v1054 = vmul.f32 %v989, %v989
    %v1055 = vmul.f32 %v990, %v990
    %v1056 = vmul.f32 %v991, %v991
    %v1057 = vmul.f32 %v992, %v992
    %v1058 = vmul.f32 %v993, %v993
    %v1059 = vmul.f32 %v994, %v994
    %v1060 = vmul.f32 %v995, %v995
    %v1061 = vmul.f32 %v996, %v996
    %v1062 = vmul.f32 %v997, %v997
    %v1063 = vmul.f32 %v998, %v998
    %v1064 = vmul.f32 %v999, %v999
    %v1065 = vmul.f32 %v1000, %v1000
    %v1066 = vmul.f32 %v1001, %v1001
    %v1067 = vmul.f32 %v1002, %v1002
    %v1068 = vmul.f32 %v1003, %v1003
    %v1069 = vmul.f32 %v1004, %v1004
    %v1070 = vmul.f32 %v1005, %v1005
    %v1071 = vmul.f32 %v1006, %v1006
    %v1072 = vmul.f32 %v1007, %v1007
    %v1073 = vmul.f32 %v1008, %v1008
    %v1074 = vmul.f32 %v1009, %v1009
    %v1075 = vmul.f32 %v1010, %v1010
    %v1076 = vmul.f32 %v1011, %v1011
    %v1077 = vmul.f32 %v1012, %v1012
    %v1078 = vmul.f32 %v1013, %v1013
    %v1079 = vmul.f32 %v1014, %v1014
    %v1080 = vmul.f32 %v1015, %v1015
    %v1081 = vmul.f32 %v1016, %v1016
    %v1082 = vmul.f32 %v1017, %v1017
    %v1083 = vmul.f32 %v1018, %v1018
    %v1084 = vmul.f32 %v1019, %v1019
    %v1085 = vmul.f32 %v1020, %v1020
    %v1086 = vmul.f32 %v1021, %v1021
    %v1087 = vmul.f32 %v1022, %v1022
    %v1088 = vmul.f32 %v1023, %v1023
    %v1089 = vmul.f32 %v1024, %v1024
    %v1090 = vmul.f32 %v1025, %v1025
    %v1091 = vmul.f32 %v1026, %v1026
    %v1092 = vmul.f32 %v1027, %v1027
    %v1093 = vmul.f32 %v1028, %v1028
    %v1094 = vmul.f32 %v1029, %v1029
    %v1095 = vmul.f32 %v1030, %v1030
    %v1096 = vmul.f32 %v1031, %v1031
    %v1097 = vmul.f32 %v1032, %v1032
    %v1098 = vadd.f32 %v1034, %v1035
    %v1099 = vadd.f32 %v1098, %v1036
    %v1100 = vadd.f32 %v1099, %v1037
    %v1101 = vadd.f32 %v1100, %v1038
    %v1102 = vadd.f32 %v1101, %v1039
    %v1103 = vadd.f32 %v1102, %v1040
    %v1104 = vadd.f32 %v1103, %v1041
    %v1105 = vadd.f32 %v1104, %v1042
    %v1106 = vadd.f32 %v1105, %v1043
    %v1107 = vadd.f32 %v1106, %v1044
    %v1108 = vadd.f32 %v1107, %v1045
    %v1109 = vadd.f32 %v1108, %v1046
    %v1110 = vadd.f32 %v1109, %v1047
    %v1111 = vadd.f32 %v1110, %v1048
    %v1112 = vadd.f32 %v1111, %v1049
    %v1113 = vadd.f32 %v1112, %v1050
    %v1114 = vadd.f32 %v1113, %v1051
    %v1115 = vadd.f32 %v1114, %v1052
    %v1116 = vadd.f32 %v1115, %v1053
    %v1117 = vadd.f32 %v1116, %v1054
    %v1118 = vadd.f32 %v1117, %v1055
    %v1119 = vadd.f32 %v1118, %v1056
    %v1120 = vadd.f32 %v1119, %v1057
    %v1121 = vadd.f32 %v1120, %v1058
    %v1122 = vadd.f32 %v1121, %v1059
    %v1123 = vadd.f32 %v1122, %v1060
    %v1124 = vadd.f32 %v1123, %v1061
    %v1125 = vadd.f32 %v1124, %v1062
    %v1126 = vadd.f32 %v1125, %v1063
    %v1127 = vadd.f32 %v1126, %v1064
    %v1128 = vadd.f32 %v1127, %v1065
    %v1129 = vadd.f32 %v1128, %v1066
    %v1130 = vadd.f32 %v1129, %v1067
    %v1131 = vadd.f32 %v1130, %v1068
    %v1132 = vadd.f32 %v1131, %v1069
    %v1133 = vadd.f32 %v1132, %v1070
    %v1134 = vadd.f32 %v1133, %v1071
    %v1135 = vadd.f32 %v1134, %v1072
    %v1136 = vadd.f32 %v1135, %v1073
    %v1137 = vadd.f32 %v1136, %v1074
    %v1138 = vadd.f32 %v1137, %v1075
    %v1139 = vadd.f32 %v1138, %v1076
    %v1140 = vadd.f32 %v1139, %v1077
    %v1141 = vadd.f32 %v1140, %v1078
    %v1142 = vadd.f32 %v1141, %v1079
    %v1143 = vadd.f32 %v1142, %v1080
    %v1144 = vadd.f32 %v1143, %v1081
    %v1145 = vadd.f32 %v1144, %v1082
    %v1146 = vadd.f32 %v1145, %v1083
    %v1147 = vadd.f32 %v1146, %v1084
    %v1148 = vadd.f32 %v1147, %v1085
    %v1149 = vadd.f32 %v1148, %v1086
    %v1150 = vadd.f32 %v1149, %v1087
    %v1151 = vadd.f32 %v1150, %v1088
    %v1152 = vadd.f32 %v1151, %v1089
    %v1153 = vadd.f32 %v1152, %v1090
    %v1154 = vadd.f32 %v1153, %v1091
    %v1155 = vadd.f32 %v1154, %v1092
    %v1156 = vadd.f32 %v1155, %v1093
    %v1157 = vadd.f32 %v1156, %v1094
    %v1158 = vadd.f32 %v1157, %v1095
    %v1159 = vadd.f32 %v1158, %v1096
    %v1160 = vadd.f32 %v1159, %v1097
    %v1161 = vrot.slane %v1160, 4
    %v1162 = vadd.f32 %v1160, %v1161
    %v1163 = vrot.slane %v1162, 2
    %v1164 = vadd.f32 %v1162, %v1163
    %v1165 = vrot.slane %v1164, 1
    %v1166 = vadd.f32 %v1164, %v1165
    %v1167 = vadd.f32 %v1033, %v1166
    %1168 = vst [vmem:[#allocation2] sm:$0x1] %v1167
    // Predicated region
    $region14: #{tpu_custom_call.1} parent=1 // pred_check
      _
    $region15: #{tpu_custom_call.1} parent=1 // pred_check_branch
      %1170 = sbr.rel (0) target = $region17
    $region16: #{tpu_custom_call.1} parent=1 // pred_region
      %s1172 = ssub.s32 16, 16
      %1173 = vsyncadd [#allocation3], %s1172
      %s1175 = sshll.u32 [#allocation2], 4
      %s1176 = int_to_ptr.vmem [resolvable:$true] %s1175
      %1178 = dma.vmem_to_hbm [thread:$0]  %s1176, 16, %s2, [#allocation3]
    $region17: #{tpu_custom_call.1} parent=1 // pred_fallthru
      _
    // Predicated region
    $region18: #{tpu_custom_call.1} parent=1 // pred_check
      _
    $region19: #{tpu_custom_call.1} parent=1 // pred_check_branch
      %1180 = sbr.rel (0) target = $region21
    $region20: #{tpu_custom_call.1} parent=1 // pred_region
      %1181 = dma.done [#allocation3], 16
    $region21: #{tpu_custom_call.1} parent=1 // pred_fallthru
      _
    %1182 = vsyncpa [#allocation3], 1

</llo_original>
